<compile_context>
chip_gen: v6e
topology: v6e:2x2x1
jax: 0.10.0
libtpu: 0.0.40
codegen_flags: <defaults>
</compile_context>

<pallas_src>
import jax
import jax.numpy as jnp
from jax.experimental import pallas as pl
from jax.experimental.pallas import tpu as pltpu

EPS = 1e-5


def adain_kernel(c_ref, s_ref, o_ref):
    # c_ref: (R, HW) content rows; s_ref: (R, HWs) style rows.
    c = c_ref[...].astype(jnp.float32)
    s = s_ref[...].astype(jnp.float32)

    n_c = c.shape[1]
    n_s = s.shape[1]

    # Centered, unbiased per-row stats (matches torch .var(dim=2) / jnp.var ddof=1).
    c_mean = jnp.sum(c, axis=-1, keepdims=True) * (1.0 / n_c)
    c_cent = c - c_mean
    c_var = jnp.sum(c_cent * c_cent, axis=-1, keepdims=True) * (1.0 / (n_c - 1)) + EPS

    s_mean = jnp.sum(s, axis=-1, keepdims=True) * (1.0 / n_s)
    s_cent = s - s_mean
    s_var = jnp.sum(s_cent * s_cent, axis=-1, keepdims=True) * (1.0 / (n_s - 1)) + EPS

    # Fused apply: out = c * scale + shift (2 VPU ops/elem); rsqrt on the EUP.
    scale = jnp.sqrt(s_var) * jax.lax.rsqrt(c_var)
    shift = s_mean - c_mean * scale
    o_ref[...] = (c * scale + shift).astype(o_ref.dtype)


def _round_up(x, m):
    return ((x + m - 1) // m) * m


def _vmem_limit_bytes():
    """Per-generation scoped-VMEM limit: ~75% of physical, queried at trace time."""
    cap = None
    try:
        info = pltpu.get_tpu_info()
        cap = getattr(info, "vmem_capacity_bytes", None)
    except Exception:
        cap = None
    if not cap or cap <= 0:
        cap = 64 << 20  # conservative fallback = v7x per-TC physical
    return min(int(cap) * 3 // 4, 128 << 20)


def _choose_rows_per_block(NC, HW, HWs, c_dtype, s_dtype, vmem_limit):
    ci = jnp.dtype(c_dtype).itemsize
    si = jnp.dtype(s_dtype).itemsize
    # DMA'd blocks (content in + output + style in), double-buffered by Pallas.
    dma_per_row = 2 * (HW * ci + HW * ci + HWs * si)
    # f32 working copies materialized inside the kernel body.
    scratch_per_row = (2 * HW + HWs) * 4
    budget = int(vmem_limit * 0.8)  # headroom for semaphores / compiler internals

    r = max(1, budget // max(dma_per_row + scratch_per_row, 1))
    r = max(8, (r // 8) * 8)
    # No point in a block larger than the problem.
    r = min(r, _round_up(NC, 8))
    # Keep >= 2 grid steps so v7x's second TensorCore has work.
    if NC >= 16:
        r = min(r, _round_up(pl.cdiv(NC, 2), 8))
    # Best effort: prefer an even number of blocks (v7x megacore sharding).
    nb = pl.cdiv(NC, r)
    if nb > 1 and nb % 2 == 1:
        cand = max(8, _round_up(pl.cdiv(NC, nb + 1), 8))
        if cand <= r and pl.cdiv(NC, cand) % 2 == 0:
            r = cand
    return r
    # TODO(synk): for very large H*W where even 8 rows exceed the VMEM budget,
    # switch to a two-kernel (stats-reduce + apply) scheme instead of shrinking
    # the lane dimension.


def adain(content, style, *, rows_per_block=None):
    N, C, H, W = content.shape
    Ns, Cs, Hs, Ws = style.shape
    assert (N, C) == (Ns, Cs), "content and style must share (N, C)"

    NC = N * C
    HW = H * W
    HWs = Hs * Ws
    assert HW > 1 and HWs > 1, "spatial size must be > 1 for unbiased variance"

    c2 = content.reshape(NC, HW)
    s2 = style.reshape(NC, HWs)

    vmem_limit = _vmem_limit_bytes()
    if rows_per_block is None:
        rows_per_block = _choose_rows_per_block(
            NC, HW, HWs, content.dtype, style.dtype, vmem_limit
        )
    R = max(8, (rows_per_block // 8) * 8)
    grid = (pl.cdiv(NC, R),)  # partial last block: OOB reads ignored, writes masked

    out2 = pl.pallas_call(
        adain_kernel,
        out_shape=jax.ShapeDtypeStruct((NC, HW), content.dtype),
        grid_spec=pltpu.PrefetchScalarGridSpec(
            num_scalar_prefetch=0,
            grid=grid,
            in_specs=[
                pl.BlockSpec((R, HW), lambda i: (i, 0)),
                pl.BlockSpec((R, HWs), lambda i: (i, 0)),
            ],
            out_specs=pl.BlockSpec((R, HW), lambda i: (i, 0)),
        ),
        compiler_params=pltpu.CompilerParams(
            dimension_semantics=("parallel",),
            vmem_limit_bytes=vmem_limit,
        ),
    )(c2, s2)

    return out2.reshape(N, C, H, W)


def adain_ref(content, style):
    # pure-JAX reference mirroring calc_mean_std / AdaIN.forward
    def mean_std(feat):
        N, C = feat.shape[:2]
        flat = feat.reshape(N, C, -1).astype(jnp.float32)
        var = jnp.var(flat, axis=2, ddof=1) + EPS
        std = jnp.sqrt(var).reshape(N, C, 1, 1)
        mean = jnp.mean(flat, axis=2).reshape(N, C, 1, 1)
        return mean, std

    s_mean, s_std = mean_std(style)
    c_mean, c_std = mean_std(content)
    normalized = (content.astype(jnp.float32) - c_mean) / c_std
    return (normalized * s_std + s_mean).astype(content.dtype)


if __name__ == "__main__":
    key = jax.random.PRNGKey(0)
    k1, k2, k3, k4 = jax.random.split(key, 4)

    # NCHW, matching the PyTorch module's expected 4-D inputs.
    content = jax.random.normal(k1, (2, 4, 16, 16), dtype=jnp.float32)
    # style may have different spatial dims; only (N, C) must match.
    style = jax.random.normal(k2, (2, 4, 8, 8), dtype=jnp.float32) * 2.0 + 0.5

    out = adain(content, style)
    jax.block_until_ready(out)
    ref = adain_ref(content, style)
    assert out.shape == content.shape
    assert jnp.allclose(out, ref, atol=1e-4, rtol=1e-4), (
        float(jnp.max(jnp.abs(out - ref)))
    )

    # Partial-last-block case (NC % R != 0) exercises the no-pad / masked-write
    # path, with a non-zero-mean content to exercise the centered variance.
    content2 = jax.random.normal(k3, (2, 6, 16, 16), dtype=jnp.float32) + 3.0
    style2 = jax.random.normal(k4, (2, 6, 8, 8), dtype=jnp.float32) * 0.5 - 1.0
    out2 = adain(content2, style2, rows_per_block=8)  # NC=12 -> blocks of 8 and 4
    jax.block_until_ready(out2)
    ref2 = adain_ref(content2, style2)
    assert out2.shape == content2.shape
    assert jnp.allclose(out2, ref2, atol=1e-4, rtol=1e-4), (
        float(jnp.max(jnp.abs(out2 - ref2)))
    )

    print("KERNEL_OK")
</pallas_src>

<mosaic_0001>
module attributes {stable_mosaic.version = 11 : i64} {
  func.func @adain_kernel(%arg0: i32, %arg1: memref<8x256xf32, #tpu.memory_space<vmem>>, %arg2: memref<8x64xf32, #tpu.memory_space<vmem>>, %arg3: memref<8x256xf32, #tpu.memory_space<vmem>>) attributes {dimension_semantics = [#tpu.dimension_semantics<parallel>], iteration_bounds = array<i64: 1>, scalar_prefetch = 0 : i64, scratch_operands = 0 : i64, tpu.core_type = #tpu.core_type<tc>, window_params = [{transform_indices = @transform_0, window_bounds = array<i64: 8, 256>}, {transform_indices = @transform_1, window_bounds = array<i64: 8, 64>}, {transform_indices = @transform_2, window_bounds = array<i64: 8, 256>}]} {
    %c0 = arith.constant 0 : index
    %c0_0 = arith.constant 0 : index
    %0 = vector.load %arg1[%c0, %c0_0] : memref<8x256xf32, #tpu.memory_space<vmem>>, vector<8x256xf32>
    %c0_1 = arith.constant 0 : index
    %c0_2 = arith.constant 0 : index
    %1 = vector.load %arg2[%c0_1, %c0_2] : memref<8x64xf32, #tpu.memory_space<vmem>>, vector<8x64xf32>
    %cst = arith.constant dense<0.000000e+00> : vector<8xf32>
    %2 = vector.multi_reduction <add>, %0, %cst [1] : vector<8x256xf32> to vector<8xf32>
    %3 = vector.shape_cast %2 : vector<8xf32> to vector<8x1xf32>
    %cst_3 = arith.constant 3.906250e-03 : f32
    %4 = vector.broadcast %cst_3 : f32 to vector<8x1xf32>
    %5 = arith.mulf %3, %4 : vector<8x1xf32>
    %6 = vector.broadcast %5 : vector<8x1xf32> to vector<8x256xf32>
    %7 = arith.subf %0, %6 : vector<8x256xf32>
    %8 = arith.mulf %7, %7 : vector<8x256xf32>
    %cst_4 = arith.constant dense<0.000000e+00> : vector<8xf32>
    %9 = vector.multi_reduction <add>, %8, %cst_4 [1] : vector<8x256xf32> to vector<8xf32>
    %10 = vector.shape_cast %9 : vector<8xf32> to vector<8x1xf32>
    %cst_5 = arith.constant 0.00392156886 : f32
    %11 = vector.broadcast %cst_5 : f32 to vector<8x1xf32>
    %12 = arith.mulf %10, %11 : vector<8x1xf32>
    %cst_6 = arith.constant 9.99999974E-6 : f32
    %13 = vector.broadcast %cst_6 : f32 to vector<8x1xf32>
    %14 = arith.addf %12, %13 : vector<8x1xf32>
    %cst_7 = arith.constant dense<0.000000e+00> : vector<8xf32>
    %15 = vector.multi_reduction <add>, %1, %cst_7 [1] : vector<8x64xf32> to vector<8xf32>
    %16 = vector.shape_cast %15 : vector<8xf32> to vector<8x1xf32>
    %cst_8 = arith.constant 1.562500e-02 : f32
    %17 = vector.broadcast %cst_8 : f32 to vector<8x1xf32>
    %18 = arith.mulf %16, %17 : vector<8x1xf32>
    %19 = vector.broadcast %18 : vector<8x1xf32> to vector<8x64xf32>
    %20 = arith.subf %1, %19 : vector<8x64xf32>
    %21 = arith.mulf %20, %20 : vector<8x64xf32>
    %cst_9 = arith.constant dense<0.000000e+00> : vector<8xf32>
    %22 = vector.multi_reduction <add>, %21, %cst_9 [1] : vector<8x64xf32> to vector<8xf32>
    %23 = vector.shape_cast %22 : vector<8xf32> to vector<8x1xf32>
    %cst_10 = arith.constant 0.0158730168 : f32
    %24 = vector.broadcast %cst_10 : f32 to vector<8x1xf32>
    %25 = arith.mulf %23, %24 : vector<8x1xf32>
    %cst_11 = arith.constant 9.99999974E-6 : f32
    %26 = vector.broadcast %cst_11 : f32 to vector<8x1xf32>
    %27 = arith.addf %25, %26 : vector<8x1xf32>
    %28 = math.sqrt %27 : vector<8x1xf32>
    %29 = math.rsqrt %14 : vector<8x1xf32>
    %30 = arith.mulf %28, %29 : vector<8x1xf32>
    %31 = arith.mulf %5, %30 : vector<8x1xf32>
    %32 = arith.subf %18, %31 : vector<8x1xf32>
    %33 = vector.broadcast %30 : vector<8x1xf32> to vector<8x256xf32>
    %34 = arith.mulf %0, %33 : vector<8x256xf32>
    %35 = vector.broadcast %32 : vector<8x1xf32> to vector<8x256xf32>
    %36 = arith.addf %34, %35 : vector<8x256xf32>
    %c0_12 = arith.constant 0 : index
    %c0_13 = arith.constant 0 : index
    %37 = vector.load %arg3[%c0_12, %c0_13] : memref<8x256xf32, #tpu.memory_space<vmem>>, vector<8x256xf32>
    tpu.vector_store %arg3[%c0_12, %c0_13], %36 {strides = array<i32>} : memref<8x256xf32, #tpu.memory_space<vmem>>, vector<8x256xf32>,
    return
  }
  func.func @transform_0(%arg0: i32) -> (i32, i32) {
    %c0_i32 = arith.constant 0 : i32
    %c0_i32_0 = arith.constant 0 : i32
    return %arg0, %c0_i32 : i32, i32
  }
  func.func @transform_1(%arg0: i32) -> (i32, i32) {
    %c0_i32 = arith.constant 0 : i32
    %c0_i32_0 = arith.constant 0 : i32
    return %arg0, %c0_i32 : i32, i32
  }
  func.func @transform_2(%arg0: i32) -> (i32, i32) {
    %c0_i32 = arith.constant 0 : i32
    %c0_i32_0 = arith.constant 0 : i32
    return %arg0, %c0_i32 : i32, i32
  }
}

</mosaic_0001>

<llo_original>
// kernel: tpu_custom_call.1
$region0: #{tpu_custom_call.1}
  #allocation0 [shape = 'u32[]', space=smem, size = 0x4, offset = 0x4, fixed_abs, tag = 'smem constant byte address 0x4 - core index']
  #allocation1 [shape = 'u32[144,128]{1,0:T(1,128)}', space=vmem, size = 0x12000, scoped, tag = 'internal scratch']
  %s0 = inlined_call_operand.hbm [shape: f32[8,256], index: 0, kind: input, shape index: {}]
  %s1 = inlined_call_operand.hbm [shape: f32[8,64], index: 1, kind: input, shape index: {}]
  %s2 = inlined_call_operand.hbm [shape: f32[8,256], index: 2, kind: output, shape index: {}]
  %s3 = sld [smem:[#allocation0]]
  $region26: #{tpu_custom_call.1} parent=0
    _
  %s5 = ssub.s32 1, %s3
  %s6 = scalar_select 0, %s5, %s3
  $region1: #{tpu_custom_call.1} parent=0
    #allocation2 [shape = 'u8[8192]{0}', space=vmem, size = 0x2000, scoped, tag = 'input window, operand 0, single buffered']
    #allocation3 [shape = 's32[1]{0}', space=sflag, size = 0x4, scoped, tag = 'scoped memory for tpu_custom_call.1']
    #allocation4 [shape = 's32[1]{0}', space=sflag, size = 0x4, scoped, tag = 'scoped memory for tpu_custom_call.1']
    #allocation5 [shape = 'u8[4096]{0}', space=vmem, size = 0x1000, scoped, tag = 'input window, operand 1, single buffered']
    #allocation6 [shape = 's32[1]{0}', space=sflag, size = 0x4, scoped, tag = 'scoped memory for tpu_custom_call.1']
    #allocation7 [shape = 'u8[8192]{0}', space=vmem, size = 0x2000, scoped, tag = 'output window, operand 0, single buffered']
    %7 = vsyncpa [#allocation3], 0
    %8 = vsyncpa [#allocation6], 0
    %9 = vsyncpa [#allocation4], 0
    // Predicated region
    $region2: #{tpu_custom_call.1} parent=1 // pred_check
      _
    $region3: #{tpu_custom_call.1} parent=1 // pred_check_branch
      %11 = sbr.rel (0) target = $region5
    $region4: #{tpu_custom_call.1} parent=1 // pred_region
      %s13 = ssub.s32 256, 256
      %14 = vsyncadd [#allocation3], %s13
      %s16 = sshll.u32 [#allocation2], 4
      %s17 = int_to_ptr.vmem [resolvable:$true] %s16
      %19 = dma.hbm_to_vmem [thread:$0]  %s0, 256, %s17, [#allocation3]
    $region5: #{tpu_custom_call.1} parent=1 // pred_fallthru
      _
    // Predicated region
    $region6: #{tpu_custom_call.1} parent=1 // pred_check
      _
    $region7: #{tpu_custom_call.1} parent=1 // pred_check_branch
      %21 = sbr.rel (0) target = $region9
    $region8: #{tpu_custom_call.1} parent=1 // pred_region
      %s23 = ssub.s32 128, 128
      %24 = vsyncadd [#allocation6], %s23
      %s26 = sshll.u32 [#allocation5], 4
      %s27 = int_to_ptr.vmem [resolvable:$true] %s26
      %29 = dma.hbm_to_vmem [thread:$0]  %s1, 128, %s27, [#allocation6]
    $region9: #{tpu_custom_call.1} parent=1 // pred_fallthru
      _
    // Predicated region
    $region10: #{tpu_custom_call.1} parent=1 // pred_check
      _
    $region11: #{tpu_custom_call.1} parent=1 // pred_check_branch
      %31 = sbr.rel (0) target = $region13
    $region12: #{tpu_custom_call.1} parent=1 // pred_region
      %32 = dma.done [#allocation3], 256
    $region13: #{tpu_custom_call.1} parent=1 // pred_fallthru
      _
    // Predicated region
    $region14: #{tpu_custom_call.1} parent=1 // pred_check
      _
    $region15: #{tpu_custom_call.1} parent=1 // pred_check_branch
      %34 = sbr.rel (0) target = $region17
    $region16: #{tpu_custom_call.1} parent=1 // pred_region
      %35 = dma.done [#allocation6], 128
    $region17: #{tpu_custom_call.1} parent=1 // pred_fallthru
      _
    %v36 = vld [vmem:[#allocation2] sm:$0xff]
    %v37 = vld [vmem:[#allocation2 + $0x8] sm:$0xff]
    %v38 = vld [vmem:[#allocation5] sm:$0xff]
    %v39 = vadd.f32 %v36, %v37
    %40 = vadd.xlane.f32.xlu0 %v39
    %v41 = vpop.xlane.xlu0 %40
    %v42 = vmul.f32 %v41, 0.00390625
    %v43 = vsub.f32 %v36, %v42
    %v44 = vsub.f32 %v37, %v42
    %v45 = vmul.f32 %v43, %v43
    %v46 = vmul.f32 %v44, %v44
    %v47 = vadd.f32 %v45, %v46
    %48 = vadd.xlane.f32.xlu0 %v47
    %v49 = vpop.xlane.xlu0 %48
    %v50 = vmul.f32 %v49, 0.003921569
    %v51 = vadd.f32 %v50, 1e-05
    %vm52 = vcmask 523264
    %v53 = vsel %vm52, %v38, 0.0
    %54 = vadd.xlane.f32.xlu0 %v53
    %v55 = vpop.xlane.xlu0 %54
    %v56 = vmul.f32 %v55, 0.015625
    %v57 = vsub.f32 %v38, %v56
    %v58 = vmul.f32 %v57, %v57
    %v59 = vsel %vm52, %v58, 0.0
    %60 = vadd.xlane.f32.xlu0 %v59
    %v61 = vpop.xlane.xlu0 %60
    %v62 = vmul.f32 %v61, 0.015873017
    %v63 = vadd.f32 %v62, 1e-05
    %v64 = vrsqrt.pop %v63
    %v65 = vmul.f32 %v63, %v64
    %vm66 = vcmp.eq.f32.partialorder %v63, inf
    %v67 = vsel %vm66, %v63, %v65
    %vm68 = vcmp.eq.f32.partialorder %v63, 0.0
    %v69 = vand.u32 %v63, 2147483648
    %v70 = vsel %vm68, %v69, %v67
    %v71 = vrsqrt.pop %v51
    %v72 = vmul.f32 %v70, %v71
    %v73 = vmul.f32 %v42, %v72
    %v74 = vsub.f32 %v56, %v73
    %v75 = vmul.f32 %v36, %v72
    %v76 = vmul.f32 %v37, %v72
    %v77 = vadd.f32 %v75, %v74
    %v78 = vadd.f32 %v76, %v74
    %79 = vst [vmem:[#allocation7] sm:$0xff] %v77
    %80 = vst [vmem:[#allocation7 + $0x8] sm:$0xff] %v78
    // Predicated region
    $region18: #{tpu_custom_call.1} parent=1 // pred_check
      _
    $region19: #{tpu_custom_call.1} parent=1 // pred_check_branch
      %82 = sbr.rel (0) target = $region21
    $region20: #{tpu_custom_call.1} parent=1 // pred_region
      %s84 = ssub.s32 256, 256
      %85 = vsyncadd [#allocation4], %s84
      %s87 = sshll.u32 [#allocation7], 4
      %s88 = int_to_ptr.vmem [resolvable:$true] %s87
      %90 = dma.vmem_to_hbm [thread:$0]  %s88, 256, %s2, [#allocation4]
    $region21: #{tpu_custom_call.1} parent=1 // pred_fallthru
      _
    // Predicated region
    $region22: #{tpu_custom_call.1} parent=1 // pred_check
      _
    $region23: #{tpu_custom_call.1} parent=1 // pred_check_branch
      %92 = sbr.rel (0) target = $region25
    $region24: #{tpu_custom_call.1} parent=1 // pred_region
      %93 = dma.done [#allocation4], 256
    $region25: #{tpu_custom_call.1} parent=1 // pred_fallthru
      _
    %94 = vsyncpa [#allocation3], 1
    %95 = vsyncpa [#allocation6], 1
    %96 = vsyncpa [#allocation4], 1

</llo_original>
